<compile_context>
chip_gen: v6e
topology: v6e:2x2x1
jax: 0.10.0
libtpu: 0.0.40
codegen_flags: <defaults>
</compile_context>

<pallas_src>
import functools

import jax
import jax.numpy as jnp
from jax.experimental import pallas as pl
from jax.experimental.pallas import tpu as pltpu


def _cdiv(a, b):
    return (a + b - 1) // b


def _round_up(x, m):
    return ((x + m - 1) // m) * m


def _vmem_capacity_bytes():
    try:
        return int(pltpu.get_tpu_info().vmem_capacity_bytes)
    except Exception:
        return 64 * 1024 * 1024  # conservative (v7x-sized) default


# ---------------------------------------------------------------------------
# Kernels
# ---------------------------------------------------------------------------

def _td_linear_kernel(x_ref, w_ref, b_ref, o_ref):
    """Un-tiled K: one row tile per grid step, weight + bias resident."""
    # x_ref: [tm, K]   w_ref: [N, K] (PyTorch layout)   b_ref: [1, N] f32
    y = jax.lax.dot_general(
        x_ref[...], w_ref[...],
        dimension_numbers=(((1,), (1,)), ((), ())),     # x @ W^T
        preferred_element_type=jnp.float32)
    o_ref[...] = (y + b_ref[...]).astype(o_ref.dtype)


def _td_linear_ktiled_kernel(x_ref, w_ref, b_ref, o_ref, acc_ref):
    """K-tiled variant for weights too large to keep resident in VMEM."""
    k = pl.program_id(1)

    @pl.when(k == 0)
    def _():
        acc_ref[...] = jnp.zeros_like(acc_ref)

    acc_ref[...] += jax.lax.dot_general(
        x_ref[...], w_ref[...],
        dimension_numbers=(((1,), (1,)), ((), ())),
        preferred_element_type=jnp.float32)

    @pl.when(k == pl.num_programs(1) - 1)
    def _():
        o_ref[...] = (acc_ref[...] + b_ref[...]).astype(o_ref.dtype)


# ---------------------------------------------------------------------------
# Wrapper
# ---------------------------------------------------------------------------

@functools.partial(jax.jit,
                   static_argnames=("batch_first", "max_weight_vmem_bytes"))
def time_distributed_linear(x, weight, bias, batch_first=False,
                            max_weight_vmem_bytes=None):
    """TimeDistributed(Linear) forward.

    x:      [..., in_features]   (any rank >= 1)
    weight: [out_features, in_features]   (PyTorch Linear convention)
    bias:   [out_features]
    """
    out_features, in_features = weight.shape
    K, N = in_features, out_features

    # ---- flatten leading dims (x.contiguous().view(-1, x.size(-1))) ----
    x2 = x.reshape(-1, K) if x.ndim > 1 else x.reshape(1, K)
    n_rows = x2.shape[0]

    xb = jnp.dtype(x.dtype).itemsize
    wb = jnp.dtype(weight.dtype).itemsize
    ob = xb
    sub = max(8, 32 // max(xb, 1))          # sublane-aligned row granularity

    # ---- generation-aware VMEM budget ----
    capacity = _vmem_capacity_bytes()
    vmem_limit = int(capacity * 0.85)
    block_budget = int(capacity * 0.70)

    bias_f32 = bias.astype(jnp.float32).reshape(1, N)

    # Resident weight footprint.  2x double-buffer accounting is conservative:
    # the index_map is constant so the second buffer is never re-fetched.
    w_resident = 2 * K * N * wb + 2 * N * 4
    weight_budget = (block_budget // 2 if max_weight_vmem_bytes is None
                     else int(max_weight_vmem_bytes))

    def _row_tile(per_row_bytes, fixed_bytes, step_bytes_per_row):
        if n_rows <= sub:
            return n_rows                               # single full-dim block
        tm = (block_budget - fixed_bytes) // max(per_row_bytes, 1)
        # ~4 MiB of x+out per grid step amortizes the per-step overhead.
        tm = min(tm, max((4 << 20) // max(step_bytes_per_row, 1), sub))
        if n_rows >= 2 * sub:
            # keep >=2 row steps so v7x can shard across both TensorCores
            tm = min(tm, _round_up(_cdiv(n_rows, 2), sub))
        tm = min(tm, (n_rows // sub) * sub)             # never exceed the array
        return max(sub, (tm // sub) * sub)

    if w_resident <= weight_budget:
        # ---------------- Path A: weight resident, K un-tiled ----------------
        per_row = 2 * (K * xb + N * ob)                 # dbl-buffered x + out
        tm = _row_tile(per_row, w_resident, K * xb + N * ob)
        grid = (_cdiv(n_rows, tm),)

        cost = pl.CostEstimate(
            flops=2 * n_rows * K * N,
            transcendentals=0,
            bytes_accessed=(n_rows * K * xb + K * N * wb + N * 4
                            + n_rows * N * ob))

        y2 = pl.pallas_call(
            _td_linear_kernel,
            out_shape=jax.ShapeDtypeStruct((n_rows, N), x.dtype),
            grid_spec=pltpu.PrefetchScalarGridSpec(
                num_scalar_prefetch=0,
                grid=grid,
                in_specs=[
                    pl.BlockSpec((tm, K), lambda i: (i, 0)),    # row tile
                    pl.BlockSpec((N, K), lambda i: (0, 0)),     # resident W
                    pl.BlockSpec((1, N), lambda i: (0, 0)),     # resident bias
                ],
                out_specs=pl.BlockSpec((tm, N), lambda i: (i, 0)),
            ),
            compiler_params=pltpu.CompilerParams(
                dimension_semantics=("parallel",),
                vmem_limit_bytes=vmem_limit),
            cost_estimate=cost,
        )(x2, weight, bias_f32)
    else:
        # ------------- Path B: K-tiled fallback (large weights) -------------
        tk = 512 if K >= 512 else _round_up(K, 128)
        k_pad = _round_up(K, tk)
        num_k = k_pad // tk
        # TODO(synk): the zero-pad of x along K costs one extra HBM round trip
        # of the activation; replace with in-kernel masking of the ragged tile.
        x_p = jnp.pad(x2, ((0, 0), (0, k_pad - K))) if k_pad != K else x2
        w_p = (jnp.pad(weight, ((0, 0), (0, k_pad - K)))
               if k_pad != K else weight)

        per_row = 2 * (tk * xb + N * ob) + N * 4        # dbl-buf x/out + acc
        fixed = 2 * (N * tk * wb) + 2 * N * 4
        tm = _row_tile(per_row, fixed, tk * xb + N * ob)
        grid = (_cdiv(n_rows, tm), num_k)               # reduction axis last

        cost = pl.CostEstimate(
            flops=2 * n_rows * k_pad * N,
            transcendentals=0,
            bytes_accessed=(n_rows * k_pad * xb + k_pad * N * wb + N * 4
                            + n_rows * N * ob))

        y2 = pl.pallas_call(
            _td_linear_ktiled_kernel,
            out_shape=jax.ShapeDtypeStruct((n_rows, N), x.dtype),
            grid_spec=pltpu.PrefetchScalarGridSpec(
                num_scalar_prefetch=0,
                grid=grid,
                in_specs=[
                    pl.BlockSpec((tm, tk), lambda i, k: (i, k)),
                    pl.BlockSpec((N, tk), lambda i, k: (0, k)),
                    pl.BlockSpec((1, N), lambda i, k: (0, 0)),
                ],
                out_specs=pl.BlockSpec((tm, N), lambda i, k: (i, 0)),
                scratch_shapes=[pltpu.VMEM((tm, N), jnp.float32)],
            ),
            compiler_params=pltpu.CompilerParams(
                dimension_semantics=("parallel", "arbitrary"),
                vmem_limit_bytes=vmem_limit),
            cost_estimate=cost,
        )(x_p, w_p, bias_f32)

    # ---- unflatten (matches the PyTorch module's reshape logic) ----
    if x.ndim == 1:
        return y2.reshape(out_features)
    if x.ndim == 2:
        return y2
    if batch_first:
        return y2.reshape(x.shape[0], -1, out_features)
    return y2.reshape(-1, x.shape[1], out_features)


if __name__ == "__main__":
    key = jax.random.PRNGKey(0)
    k_x, k_w, k_b, k_x2, k_w2, k_b2 = jax.random.split(key, 6)

    # ---- typical NER dense-head shapes (resident-weight path) ----
    batch, seq, in_features, out_features = 2, 8, 32, 32
    x = jax.random.normal(k_x, (batch, seq, in_features), dtype=jnp.float32)
    weight = jax.random.normal(k_w, (out_features, in_features),
                               dtype=jnp.float32) * 0.1
    bias = jax.random.normal(k_b, (out_features,), dtype=jnp.float32) * 0.1

    # batch_first=True path (the common NER head configuration).
    y = jax.block_until_ready(
        time_distributed_linear(x, weight, bias, batch_first=True))
    y_ref = (x.reshape(-1, in_features) @ weight.T + bias).reshape(
        batch, -1, out_features)
    assert y.shape == (batch, seq, out_features)
    assert jnp.allclose(y, y_ref, atol=1e-5, rtol=1e-5)

    # 2-D passthrough path (len(x.size()) <= 2).
    y2d = jax.block_until_ready(
        time_distributed_linear(x[0], weight, bias, batch_first=True))
    assert jnp.allclose(y2d, x[0] @ weight.T + bias, atol=1e-5, rtol=1e-5)

    # batch_first=False path (module default; caller supplies [seq, batch, F]).
    x_tb = jnp.transpose(x, (1, 0, 2))
    y_tb = jax.block_until_ready(
        time_distributed_linear(x_tb, weight, bias, batch_first=False))
    y_tb_ref = (x_tb.reshape(-1, in_features) @ weight.T + bias).reshape(
        -1, batch, out_features)
    assert jnp.allclose(y_tb, y_tb_ref, atol=1e-5, rtol=1e-5)

    # ---- K-tiled fallback path (forced via a tiny weight budget) ----
    b2, s2, k2, n2 = 2, 16, 1100, 64
    x_big = jax.random.normal(k_x2, (b2, s2, k2), dtype=jnp.float32)
    w_big = jax.random.normal(k_w2, (n2, k2), dtype=jnp.float32) * 0.03
    bias_big = jax.random.normal(k_b2, (n2,), dtype=jnp.float32) * 0.1
    y_big = jax.block_until_ready(
        time_distributed_linear(x_big, w_big, bias_big, batch_first=True,
                                max_weight_vmem_bytes=1))
    y_big_ref = (jnp.matmul(x_big.reshape(-1, k2), w_big.T,
                            precision=jax.lax.Precision.HIGHEST)
                 + bias_big).reshape(b2, -1, n2)
    assert jnp.allclose(y_big, y_big_ref, atol=2e-3, rtol=2e-3)

    print("KERNEL_OK")
</pallas_src>

<mosaic_0001>
module attributes {stable_mosaic.version = 11 : i64} {
  func.func @_td_linear_kernel(%arg0: i32, %arg1: memref<8x32xf32, #tpu.memory_space<vmem>>, %arg2: memref<32x32xf32, #tpu.memory_space<vmem>>, %arg3: memref<1x32xf32, #tpu.memory_space<vmem>>, %arg4: memref<8x32xf32, #tpu.memory_space<vmem>>) attributes {dimension_semantics = [#tpu.dimension_semantics<parallel>], iteration_bounds = array<i64: 2>, scalar_prefetch = 0 : i64, scratch_operands = 0 : i64, tpu.core_type = #tpu.core_type<tc>, window_params = [{transform_indices = @transform_0, window_bounds = array<i64: 8, 32>}, {pipeline_mode = #tpu.pipeline_mode<synchronous>, transform_indices = @transform_1, window_bounds = array<i64: 32, 32>}, {pipeline_mode = #tpu.pipeline_mode<synchronous>, transform_indices = @transform_2, window_bounds = array<i64: 1, 32>}, {transform_indices = @transform_3, window_bounds = array<i64: 8, 32>}]} {
    %c0 = arith.constant 0 : index
    %c0_0 = arith.constant 0 : index
    %0 = vector.load %arg1[%c0, %c0_0] : memref<8x32xf32, #tpu.memory_space<vmem>>, vector<8x32xf32>
    %c0_1 = arith.constant 0 : index
    %c0_2 = arith.constant 0 : index
    %1 = vector.load %arg2[%c0_1, %c0_2] : memref<32x32xf32, #tpu.memory_space<vmem>>, vector<32x32xf32>
    %cst = arith.constant dense<0.000000e+00> : vector<8x32xf32>
    %2 = tpu.matmul %0, %1, %cst {dimension_numbers = #tpu.dot_dimension_numbers<[1], [1], [0], [0], [0, 0, 1, 0], [], []>} : vector<8x32xf32>, vector<32x32xf32>, vector<8x32xf32> -> vector<8x32xf32>
    %c0_3 = arith.constant 0 : index
    %c0_4 = arith.constant 0 : index
    %3 = vector.load %arg3[%c0_3, %c0_4] : memref<1x32xf32, #tpu.memory_space<vmem>>, vector<1x32xf32>
    %4 = vector.broadcast %3 : vector<1x32xf32> to vector<8x32xf32>
    %5 = arith.addf %2, %4 : vector<8x32xf32>
    %c0_5 = arith.constant 0 : index
    %c0_6 = arith.constant 0 : index
    %6 = vector.load %arg4[%c0_5, %c0_6] : memref<8x32xf32, #tpu.memory_space<vmem>>, vector<8x32xf32>
    tpu.vector_store %arg4[%c0_5, %c0_6], %5 {strides = array<i32>} : memref<8x32xf32, #tpu.memory_space<vmem>>, vector<8x32xf32>,
    return
  }
  func.func @transform_0(%arg0: i32) -> (i32, i32) {
    %c0_i32 = arith.constant 0 : i32
    %c0_i32_0 = arith.constant 0 : i32
    return %arg0, %c0_i32 : i32, i32
  }
  func.func @transform_1(%arg0: i32) -> (i32, i32) {
    %c0_i32 = arith.constant 0 : i32
    %c0_i32_0 = arith.constant 0 : i32
    %c0_i32_1 = arith.constant 0 : i32
    return %c0_i32, %c0_i32_0 : i32, i32
  }
  func.func @transform_2(%arg0: i32) -> (i32, i32) {
    %c0_i32 = arith.constant 0 : i32
    %c0_i32_0 = arith.constant 0 : i32
    %c0_i32_1 = arith.constant 0 : i32
    return %c0_i32, %c0_i32_0 : i32, i32
  }
  func.func @transform_3(%arg0: i32) -> (i32, i32) {
    %c0_i32 = arith.constant 0 : i32
    %c0_i32_0 = arith.constant 0 : i32
    return %arg0, %c0_i32 : i32, i32
  }
}

</mosaic_0001>

<llo_original>
// kernel: time_distributed_linear.1
$region0: #{time_distributed_linear.1}
  #allocation0 [shape = 'u32[]', space=smem, size = 0x4, offset = 0x4, fixed_abs, tag = 'smem constant byte address 0x4 - core index']
  #allocation1 [shape = 'u32[144,128]{1,0:T(1,128)}', space=vmem, size = 0x12000, scoped, tag = 'internal scratch']
  %s0 = inlined_call_operand.hbm [shape: f32[16,32], index: 0, kind: input, shape index: {}]
  %s1 = inlined_call_operand.hbm [shape: f32[32,32], index: 1, kind: input, shape index: {}]
  %s2 = inlined_call_operand.vmem [shape: f32[1,32], index: 2, kind: input, shape index: {}]
  %s3 = inlined_call_operand.hbm [shape: f32[16,32], index: 3, kind: output, shape index: {}]
  %s4 = sld [smem:[#allocation0]]
  $region53: #{time_distributed_linear.1} parent=0
    _
  %s6 = ssub.s32 1, %s4
  %s7 = scalar_select 0, %s6, %s4
  $region1: #{time_distributed_linear.1} parent=0
    #allocation2 [shape = 'u8[8192]{0}', space=vmem, size = 0x2000, scoped, tag = 'input window, operand 0']
    #allocation3 [shape = 's32[2]{0}', space=sflag, size = 0x8, scoped, tag = 'scoped memory for time_distributed_linear.1']
    #allocation4 [shape = 's32[2]{0}', space=sflag, size = 0x8, scoped, tag = 'scoped memory for time_distributed_linear.1']
    #allocation5 [shape = 'u8[16384]{0}', space=vmem, size = 0x4000, scoped, tag = 'input window, operand 1, single buffered']
    #allocation6 [shape = 's32[1]{0}', space=sflag, size = 0x4, scoped, tag = 'scoped memory for time_distributed_linear.1']
    #allocation7 [shape = 'u8[8192]{0}', space=vmem, size = 0x2000, scoped, tag = 'output window, operand 0']
    %8 = vsyncpa [#allocation3], 0
    %s9 = scalar_lea.sflag [#allocation3], 1
    %10 = vsyncpa %s9, 0
    %11 = vsyncpa [#allocation6], 0
    %12 = vsyncpa [#allocation4], 0
    %s13 = scalar_lea.sflag [#allocation4], 1
    %14 = vsyncpa %s13, 0
    loop: start=0, step=1, limit=4
    $region2: #{time_distributed_linear.1} parent=1 // loop_pre_header
      _
    $region3: #{time_distributed_linear.1} parent=1 // loop_header
      %s16 = sphi 0, %s20
      %p17 = scmp.ge.s32.totalorder %s16, 4
      %s26 = sphi 0, %s28
      %s29 = sphi 0, %s26
      %s30 = sphi 0, %s29
      %s46 = sphi 0, %s30
      %s50 = sphi 0, %s50
      %s52 = sphi 0, %s50
      %s53 = sphi 0, %s52
      %s67 = sphi 0, %s53
      %s71 = sphi 0, %s71
      %s73 = sphi 0, %s71
      %s74 = sphi 0, %s73
      %s88 = sphi 0, %s74
      %s94 = sphi 0, %s96
      %s97 = sphi 0, %s94
      %s98 = sphi 0, %s97
      %s114 = sphi 0, %s98
    $region4: #{time_distributed_linear.1} parent=1 // loop_header_branch
      %19 = sbr.rel (%p17) target = $region8
    $region5: #{time_distributed_linear.1} parent=1 // loop_body
      %s21 = ssub.s32 %s16, 1
      %s22 = ssub.s32 %s16, 2
      %s23 = sadd.s32 %s16, 1
      %s24 = ssub.s32 %s16, %s23
      %p25 = scmp.eq.s32.totalorder %s24, 0
      %s27 = sadd.s32 %s26, 1
      %s28 = scalar_select %p25, %s26, %s27
      %p31 = pneg %p25
      %p32 = scmp.eq.s32.totalorder %s16, 1
      %p33 = por %p31, %p32
      %p34 = scmp.ne.s32.totalorder %s26, %s29
      %p35 = scmp.eq.s32.totalorder %s16, 0
      %p36 = por %p34, %p35
      %p37 = scmp.ne.s32.totalorder %s26, %s29
      %p38 = scmp.eq.s32.totalorder %s21, 1
      %p39 = por %p37, %p38
      %p40 = scmp.ne.s32.totalorder %s29, %s30
      %p41 = scmp.eq.s32.totalorder %s21, 0
      %p42 = por %p40, %p41
      %p43 = scmp.ne.s32.totalorder %s29, %s30
      %p44 = scmp.eq.s32.totalorder %s22, 1
      %p45 = por %p43, %p44
      %p47 = scmp.ne.s32.totalorder %s30, %s46
      %p48 = scmp.eq.s32.totalorder %s22, 0
      %p49 = por %p47, %p48
      %s51 = sadd.s32 %s50, 1
      %p54 = scmp.eq.s32.totalorder %s16, 1
      %p55 = scmp.ne.s32.totalorder %s50, %s52
      %p56 = scmp.eq.s32.totalorder %s16, 0
      %p57 = por %p55, %p56
      %p58 = scmp.ne.s32.totalorder %s50, %s52
      %p59 = scmp.eq.s32.totalorder %s21, 1
      %p60 = por %p58, %p59
      %p61 = scmp.ne.s32.totalorder %s52, %s53
      %p62 = scmp.eq.s32.totalorder %s21, 0
      %p63 = por %p61, %p62
      %p64 = scmp.ne.s32.totalorder %s52, %s53
      %p65 = scmp.eq.s32.totalorder %s22, 1
      %p66 = por %p64, %p65
      %p68 = scmp.ne.s32.totalorder %s53, %s67
      %p69 = scmp.eq.s32.totalorder %s22, 0
      %p70 = por %p68, %p69
      %s72 = sadd.s32 %s71, 1
      %p75 = scmp.eq.s32.totalorder %s16, 1
      %p76 = scmp.ne.s32.totalorder %s71, %s73
      %p77 = scmp.eq.s32.totalorder %s16, 0
      %p78 = por %p76, %p77
      %p79 = scmp.ne.s32.totalorder %s71, %s73
      %p80 = scmp.eq.s32.totalorder %s21, 1
      %p81 = por %p79, %p80
      %p82 = scmp.ne.s32.totalorder %s73, %s74
      %p83 = scmp.eq.s32.totalorder %s21, 0
      %p84 = por %p82, %p83
      %p85 = scmp.ne.s32.totalorder %s73, %s74
      %p86 = scmp.eq.s32.totalorder %s22, 1
      %p87 = por %p85, %p86
      %p89 = scmp.ne.s32.totalorder %s74, %s88
      %p90 = scmp.eq.s32.totalorder %s22, 0
      %p91 = por %p89, %p90
      %s92 = ssub.s32 %s16, %s23
      %p93 = scmp.eq.s32.totalorder %s92, 0
      %s95 = sadd.s32 %s94, 1
      %s96 = scalar_select %p93, %s94, %s95
      %p99 = pneg %p93
      %p100 = scmp.eq.s32.totalorder %s16, 1
      %p101 = por %p99, %p100
      %p102 = scmp.ne.s32.totalorder %s94, %s97
      %p103 = scmp.eq.s32.totalorder %s16, 0
      %p104 = por %p102, %p103
      %p105 = scmp.ne.s32.totalorder %s94, %s97
      %p106 = scmp.eq.s32.totalorder %s21, 1
      %p107 = por %p105, %p106
      %p108 = scmp.ne.s32.totalorder %s97, %s98
      %p109 = scmp.eq.s32.totalorder %s21, 0
      %p110 = por %p108, %p109
      %p111 = scmp.ne.s32.totalorder %s97, %s98
      %p112 = scmp.eq.s32.totalorder %s22, 1
      %p113 = por %p111, %p112
      %p115 = scmp.ne.s32.totalorder %s98, %s114
      %p116 = scmp.eq.s32.totalorder %s22, 0
      %p117 = por %p115, %p116
      %p118 = scmp.le.s32.totalorder 1, %s16
      %p119 = scmp.lt.s32.totalorder %s16, 3
      %p120 = pnand %p118, %p119
      %p121 = pneg %p120
      // Predicated region
      $region9: #{time_distributed_linear.1} parent=5 // pred_check
        _
      $region10: #{time_distributed_linear.1} parent=5 // pred_check_branch
        %123 = sbr.rel (%p120) target = $region12
      $region11: #{time_distributed_linear.1} parent=5 // pred_region
        %s124 = ssub.s32 %s16, 1
        // Predicated region
        $region13: #{time_distributed_linear.1} parent=11 // pred_check
          %p125 = pneg %p63
        $region14: #{time_distributed_linear.1} parent=11 // pred_check_branch
          %127 = sbr.rel (%p125) target = $region16
        $region15: #{time_distributed_linear.1} parent=11 // pred_region
          %s129 = ssub.s32 512, 512
          %130 = vsyncadd [#allocation6], %s129
          %s131 = sshll.u32 [#allocation5], 4
          %s132 = int_to_ptr.vmem [resolvable:$true] %s131
          %137 = dma.hbm_to_vmem [thread:$0]  %s1, 512, %s132, [#allocation6], 128, 128, 8
        $region16: #{time_distributed_linear.1} parent=11 // pred_fallthru
          _
        // Predicated region
        $region17: #{time_distributed_linear.1} parent=11 // pred_check
          %p138 = pneg %p84
        $region18: #{time_distributed_linear.1} parent=11 // pred_check_branch
          %140 = sbr.rel (%p138) target = $region20
        $region19: #{time_distributed_linear.1} parent=11 // pred_region
          _
        $region20: #{time_distributed_linear.1} parent=11 // pred_fallthru
          _
      $region12: #{time_distributed_linear.1} parent=5 // pred_fallthru
        _
      %p141 = scmp.lt.s32.totalorder %s16, 2
      // Predicated region
      $region21: #{time_distributed_linear.1} parent=5 // pred_check
        %p142 = pneg %p141
      $region22: #{time_distributed_linear.1} parent=5 // pred_check_branch
        %144 = sbr.rel (%p142) target = $region24
      $region23: #{time_distributed_linear.1} parent=5 // pred_region
        // Predicated region
        $region25: #{time_distributed_linear.1} parent=23 // pred_check
          %p145 = pneg %p36
        $region26: #{time_distributed_linear.1} parent=23 // pred_check_branch
          %147 = sbr.rel (%p145) target = $region28
        $region27: #{time_distributed_linear.1} parent=23 // pred_region
          %s148 = sand.u32 %s26, 1
          %s149 = scalar_lea.sflag [#allocation3], %s148
          %s150 = sand.u32 %s26, 1
          %s151 = smul.addr %s150, 8
          %s152 = scalar_lea.vmem [#allocation2], %s151
          %s154 = ssub.s32 128, 128
          %155 = vsyncadd %s149, %s154
          %s156 = smul.addr %s16, 128
          %s157 = scalar_lea.hbm %s0, %s156
          %s159 = sshll.u32 %s152, 4
          %s160 = int_to_ptr.vmem [resolvable:$true] %s159
          %162 = dma.hbm_to_vmem [thread:$0]  %s157, 128, %s160, %s149
        $region28: #{time_distributed_linear.1} parent=23 // pred_fallthru
          _
      $region24: #{time_distributed_linear.1} parent=5 // pred_fallthru
        _
      %p163 = scmp.le.s32.totalorder 1, %s16
      %p164 = scmp.lt.s32.totalorder %s16, 3
      %p165 = pnand %p163, %p164
      %p166 = pneg %p165
      // Predicated region
      $region29: #{time_distributed_linear.1} parent=5 // pred_check
        _
      $region30: #{time_distributed_linear.1} parent=5 // pred_check_branch
        %168 = sbr.rel (%p165) target = $region32
      $region31: #{time_distributed_linear.1} parent=5 // pred_region
        %s169 = ssub.s32 %s16, 1
        %s170 = sand.u32 %s29, 1
        %s171 = scalar_lea.sflag [#allocation3], %s170
        %s172 = sand.u32 %s29, 1
        %s173 = smul.addr %s172, 8
        %s174 = scalar_lea.vmem [#allocation2], %s173
        // Predicated region
        $region33: #{time_distributed_linear.1} parent=31 // pred_check
          %p175 = pneg %p42
        $region34: #{time_distributed_linear.1} parent=31 // pred_check_branch
          %177 = sbr.rel (%p175) target = $region36
        $region35: #{time_distributed_linear.1} parent=31 // pred_region
          %178 = dma.done %s171, 128
        $region36: #{time_distributed_linear.1} parent=31 // pred_fallthru
          _
        // Predicated region
        $region37: #{time_distributed_linear.1} parent=31 // pred_check
          %p179 = pneg %p63
        $region38: #{time_distributed_linear.1} parent=31 // pred_check_branch
          %181 = sbr.rel (%p179) target = $region40
        $region39: #{time_distributed_linear.1} parent=31 // pred_region
          %182 = dma.done [#allocation6], 512
        $region40: #{time_distributed_linear.1} parent=31 // pred_fallthru
          _
        %s183 = sand.u32 %s29, 1
        %s184 = scalar_lea.sflag [#allocation3], %s183
        %s185 = sand.u32 %s29, 1
        %s186 = smul.addr %s185, 8
        %s187 = scalar_lea.vmem [#allocation2], %s186
        %p188 = pneg %p42
        %p189 = pneg %p39
        %p190 = pneg %p63
        %p191 = pneg %p60
        %p192 = pneg %p84
        %p193 = pneg %p81
        %p194 = pneg %p110
        %p195 = pneg %p107
        %s196 = sand.u32 %s97, 1
        %s197 = scalar_lea.sflag [#allocation4], %s196
        %s198 = sand.u32 %s97, 1
        %s199 = smul.addr %s198, 8
        %s200 = scalar_lea.vmem [#allocation7], %s199
        %v201 = vld [vmem:[%s174] sm:$0xff]
        %v202 = vld [vmem:[#allocation5] sm:$0xff]
        %v203 = vld [vmem:[#allocation5 + $0x8] sm:$0xff]
        %v204 = vld [vmem:[#allocation5 + $0x10] sm:$0xff]
        %v205 = vld [vmem:[#allocation5 + $0x18] sm:$0xff]
        %v206 = vld [vmem:[%s2] sm:$0x1]
        %v208 = vlaneseq
        %v209 = vshrl.u32 %v208, 7
        %v210 = vsub.s32 0, %v209
        %v211 = vrot.slane %v206, %v210
        %vm213 = vcmask 261120
        %v215 = vsel %vm213, %v201, 0
        %v218 = vsel %vm213, %v202, 0
        %v221 = vsel %vm213, %v203, 0
        %v224 = vsel %vm213, %v204, 0
        %v227 = vsel %vm213, %v205, 0
        %229 = vmatprep.subr.mxu0 0.0
        %230 = vmatpush1.xpose.msra.mxu0 0.0
        %231 = vmatprep.subr.mxu0 0.0
        %232 = vmatpush1.xpose.msra.mxu0 0.0
        %233 = vmatprep.subr.mxu0 0.0
        %234 = vmatpush1.xpose.msra.mxu0 0.0
        %235 = vmatprep.subr.mxu0 0.0
        %236 = vmatpush1.xpose.msra.mxu0 0.0
        %237 = vmatprep.subr.mxu0 0.0
        %238 = vmatpush1.xpose.msra.mxu0 0.0
        %239 = vmatprep.subr.mxu0 0.0
        %240 = vmatpush1.xpose.msra.mxu0 0.0
        %241 = vmatprep.subr.mxu0 0.0
        %242 = vmatpush1.xpose.msra.mxu0 0.0
        %243 = vmatprep.subr.mxu0 0.0
        %244 = vmatpush1.xpose.msra.mxu0 0.0
        %245 = vmatprep.subr.mxu0 0.0
        %246 = vmatpush1.xpose.msra.mxu0 0.0
        %247 = vmatprep.subr.mxu0 0.0
        %248 = vmatpush1.xpose.msra.mxu0 0.0
        %249 = vmatprep.subr.mxu0 0.0
        %250 = vmatpush1.xpose.msra.mxu0 0.0
        %251 = vmatprep.subr.mxu0 0.0
        %252 = vmatpush1.xpose.msra.mxu0 0.0
        %253 = vmatprep.subr.mxu0 0.0
        %254 = vmatpush1.xpose.msra.mxu0 %v227
        %255 = vmatprep.subr.mxu0 0.0
        %256 = vmatpush1.xpose.msra.mxu0 %v224
        %257 = vmatprep.subr.mxu0 0.0
        %258 = vmatpush1.xpose.msra.mxu0 %v221
        %259 = vmatprep.subr.mxu0 0.0
        %260 = vmatpush1.xpose.msra.mxu0 %v218
        %261 = vmatprep.subr.mxu0 0.0
        %262 = vmatpush2.xpose.msra.mxu0 0.0
        %263 = vmatprep.subr.mxu0 0.0
        %264 = vmatpush2.xpose.msra.mxu0 0.0
        %265 = vmatprep.subr.mxu0 0.0
        %266 = vmatpush2.xpose.msra.mxu0 0.0
        %267 = vmatprep.subr.mxu0 0.0
        %268 = vmatpush2.xpose.msra.mxu0 0.0
        %269 = vmatprep.subr.mxu0 0.0
        %270 = vmatpush2.xpose.msra.mxu0 0.0
        %271 = vmatprep.subr.mxu0 0.0
        %272 = vmatpush2.xpose.msra.mxu0 0.0
        %273 = vmatprep.subr.mxu0 0.0
        %274 = vmatpush2.xpose.msra.mxu0 0.0
        %275 = vmatprep.subr.mxu0 0.0
        %276 = vmatpush2.xpose.msra.mxu0 0.0
        %277 = vmatprep.subr.mxu0 0.0
        %278 = vmatpush2.xpose.msra.mxu0 0.0
        %279 = vmatprep.subr.mxu0 0.0
        %280 = vmatpush2.xpose.msra.mxu0 0.0
        %281 = vmatprep.subr.mxu0 0.0
        %282 = vmatpush2.xpose.msra.mxu0 0.0
        %283 = vmatprep.subr.mxu0 0.0
        %284 = vmatpush2.xpose.msra.mxu0 0.0
        %285 = vmatprep.subr.mxu0 0.0
        %286 = vmatpush2.xpose.msra.mxu0 0.0
        %287 = vmatprep.subr.mxu0 0.0
        %288 = vmatpush2.xpose.msra.mxu0 0.0
        %289 = vmatprep.subr.mxu0 0.0
        %290 = vmatpush2.xpose.msra.mxu0 0.0
        %291 = vmatprep.subr.mxu0 0.0
        %292 = vmatpush2.xpose.msra.mxu0 0.0
        %293 = vmatprep.mubr.f32.mxu0 0.0
        %294 = vmatmul.mubr.f32.gmra.mxu0 %v215
        %v295 = vpop.f32.mrf.mxu0
        %v296 = vadd.f32 %v211, %v295
        %v297 = vpop.f32.mrf.mxu0
        %298 = vdwg.mxu0
        %299 = vst.msk [vmem:[%s200] sm:$0xff] %vm213, %v296
        %s300 = sand.u32 %s97, 1
        %s301 = scalar_lea.sflag [#allocation4], %s300
        %s302 = sand.u32 %s97, 1
        %s303 = smul.addr %s302, 8
        %s304 = scalar_lea.vmem [#allocation7], %s303
        // Predicated region
        $region41: #{time_distributed_linear.1} parent=31 // pred_check
          %p305 = pneg %p107
        $region42: #{time_distributed_linear.1} parent=31 // pred_check_branch
          %307 = sbr.rel (%p305) target = $region44
        $region43: #{time_distributed_linear.1} parent=31 // pred_region
          %s309 = ssub.s32 128, 128
          %310 = vsyncadd %s301, %s309
          %s311 = smul.addr %s21, 128
          %s312 = scalar_lea.hbm %s3, %s311
          %s314 = sshll.u32 %s304, 4
          %s315 = int_to_ptr.vmem [resolvable:$true] %s314
          %317 = dma.vmem_to_hbm [thread:$0]  %s315, 128, %s312, %s301
        $region44: #{time_distributed_linear.1} parent=31 // pred_fallthru
          _
      $region32: #{time_distributed_linear.1} parent=5 // pred_fallthru
        _
      %p318 = scmp.le.s32.totalorder 2, %s16
      // Predicated region
      $region45: #{time_distributed_linear.1} parent=5 // pred_check
        %p319 = pneg %p318
      $region46: #{time_distributed_linear.1} parent=5 // pred_check_branch
        %321 = sbr.rel (%p319) target = $region48
      $region47: #{time_distributed_linear.1} parent=5 // pred_region
        %s322 = ssub.s32 %s16, 2
        // Predicated region
        $region49: #{time_distributed_linear.1} parent=47 // pred_check
          %p323 = pneg %p113
        $region50: #{time_distributed_linear.1} parent=47 // pred_check_branch
          %325 = sbr.rel (%p323) target = $region52
        $region51: #{time_distributed_linear.1} parent=47 // pred_region
          %s326 = sand.u32 %s98, 1
          %s327 = scalar_lea.sflag [#allocation4], %s326
          %s328 = sand.u32 %s98, 1
          %s329 = smul.addr %s328, 8
          %s330 = scalar_lea.vmem [#allocation7], %s329
          %331 = dma.done %s327, 128
        $region52: #{time_distributed_linear.1} parent=47 // pred_fallthru
          _
      $region48: #{time_distributed_linear.1} parent=5 // pred_fallthru
        _
    $region6: #{time_distributed_linear.1} parent=1 // loop_footer
      %s20 = sadd.s32 1, %s16
    $region7: #{time_distributed_linear.1} parent=1 // loop_footer_branch
      %15 = sbr.rel target = $region3
    $region8: #{time_distributed_linear.1} parent=1 // loop_exit
      _
    %332 = vsyncpa [#allocation3], 1
    %s333 = scalar_lea.sflag [#allocation3], 1
    %334 = vsyncpa %s333, 1
    %335 = vsyncpa [#allocation6], 1
    %336 = vsyncpa [#allocation4], 1
    %s337 = scalar_lea.sflag [#allocation4], 1
    %338 = vsyncpa %s337, 1

</llo_original>
